<compile_context>
chip_gen: v5e
topology: v5e:2x2
jax: 0.10.0
libtpu: 0.0.40
codegen_flags: <defaults>
</compile_context>

<pallas_src>
import functools

import jax
import jax.numpy as jnp
from jax.experimental import pallas as pl
from jax.experimental.pallas import tpu as pltpu


def _round_up(x: int, m: int) -> int:
    return ((x + m - 1) // m) * m


def _mlp_kernel(*refs, num_layers: int, slope: float, act_last: bool):
    """Fused MLP forward for one batch tile.

    refs = (x_ref, w0_ref, b0_ref, w1_ref, b1_ref, ..., o_ref)
      x_ref : [TB, In0_pad]        (VMEM)
      wl_ref: [Inl_pad, Outl_pad]  (VMEM, pre-transposed, zero-padded)
      bl_ref: [1, Outl_pad]        (VMEM, zero-padded)
      o_ref : [TB, OutL_pad]       (VMEM)
    """
    x_ref = refs[0]
    o_ref = refs[1 + 2 * num_layers]

    x = x_ref[...]
    for l in range(num_layers):
        w = refs[1 + 2 * l][...]
        b = refs[2 + 2 * l][...]
        # MXU matmul with f32 accumulation; bias + activation epilogue in f32.
        y = jnp.dot(x, w, preferred_element_type=jnp.float32) + b.astype(jnp.float32)
        if l < num_layers - 1 or act_last:
            # LeakyReLU (negative_slope in [0, 1]) as max(y, slope*y).
            y = jnp.maximum(y, slope * y)
        x = y
    o_ref[...] = x.astype(o_ref.dtype)


class MLPPallas:
    """Mirrors the PyTorch MLP module's forward semantics (fused kernel)."""

    def __init__(self, mlp_dimensions, key, last_non_linearity=None,
                 negative_slope=0.01, dtype=jnp.float32):
        assert len(mlp_dimensions) > 0
        self.negative_slope = float(negative_slope)
        self.last_non_linearity = last_non_linearity
        self.dims = list(mlp_dimensions)
        self.pad_dims = [_round_up(d, 128) for d in self.dims]

        self.params = []   # original (W [Out, In], b [Out]) -- PyTorch layout
        self.packed = []   # padded, pre-transposed (W.T [In_pad, Out_pad], b [1, Out_pad])
        for i in range(1, len(self.dims)):
            fan_in, fan_out = self.dims[i - 1], self.dims[i]
            key, kw, kb = jax.random.split(key, 3)
            # Deterministic init (mimics PyTorch uniform(-1/sqrt(fan_in), +1/sqrt(fan_in)))
            bound = 1.0 / (fan_in ** 0.5)
            w = jax.random.uniform(kw, (fan_out, fan_in), dtype, -bound, bound)
            b = jax.random.uniform(kb, (fan_out,), dtype, -bound, bound)
            self.params.append((w, b))

            in_p, out_p = self.pad_dims[i - 1], self.pad_dims[i]
            w_t = jnp.zeros((in_p, out_p), dtype).at[:fan_in, :fan_out].set(w.T)
            b_p = jnp.zeros((1, out_p), dtype).at[0, :fan_out].set(b)
            self.packed.append((w_t, b_p))

    def __call__(self, x):
        B, in_dim = x.shape
        assert in_dim == self.dims[0]
        in_p = self.pad_dims[0]
        out_dim = self.dims[-1]
        out_p = self.pad_dims[-1]
        num_layers = len(self.packed)

        # Batch tile: multiple of 8 (f32 sublane), capped at 128; pad batch so
        # the grid divides evenly.  grid axis is "parallel" -> sharded across
        # TensorCores on multi-core parts (v7x), harmless on v5e/v6e.
        tb = 128 if B > 128 else _round_up(B, 8)
        b_pad = _round_up(B, tb)

        x_p = jnp.zeros((b_pad, in_p), x.dtype).at[:B, :in_dim].set(x)

        kernel = functools.partial(
            _mlp_kernel,
            num_layers=num_layers,
            slope=self.negative_slope,
            act_last=bool(self.last_non_linearity),
        )

        in_specs = [pl.BlockSpec((tb, in_p), lambda i: (i, 0))]
        flat_wb = []
        for (w_t, b_p) in self.packed:
            ip, op = w_t.shape
            in_specs.append(pl.BlockSpec((ip, op), lambda i: (0, 0)))
            in_specs.append(pl.BlockSpec((1, op), lambda i: (0, 0)))
            flat_wb.extend([w_t, b_p])

        out = pl.pallas_call(
            kernel,
            out_shape=jax.ShapeDtypeStruct((b_pad, out_p), x.dtype),
            grid=(b_pad // tb,),
            in_specs=in_specs,
            out_specs=pl.BlockSpec((tb, out_p), lambda i: (i, 0)),
            compiler_params=pltpu.CompilerParams(
                dimension_semantics=("parallel",),
            ),
        )(x_p, *flat_wb)

        # Strip batch / feature padding.
        return out[:B, :out_dim]


def _reference(x, params, negative_slope, last_non_linearity):
    ref = x
    n = len(params)
    for i, (w, b) in enumerate(params):
        ref = ref @ w.T + b
        if i < n - 1 or last_non_linearity:
            ref = jnp.where(ref >= 0, ref, negative_slope * ref)
    return ref


if __name__ == "__main__":
    key = jax.random.PRNGKey(0)
    k_in, k_model = jax.random.split(key)

    mlp_dimensions = [32, 64, 48, 16]   # 3 Linear layers
    batch = 8
    x = jax.random.normal(k_in, (batch, mlp_dimensions[0]), jnp.float32)

    # Default path (no activation on last layer).
    model = MLPPallas(mlp_dimensions, k_model, last_non_linearity=None)
    y = jax.block_until_ready(model(x))
    ref = _reference(x, model.params, model.negative_slope, False)
    assert y.shape == (batch, mlp_dimensions[-1])
    assert jnp.allclose(y, ref, atol=1e-4, rtol=1e-4)

    # last_non_linearity=True path (activation applied to final layer too).
    model2 = MLPPallas(mlp_dimensions, k_model, last_non_linearity=True)
    y2 = jax.block_until_ready(model2(x))
    ref2 = _reference(x, model2.params, model2.negative_slope, True)
    assert jnp.allclose(y2, ref2, atol=1e-4, rtol=1e-4)

    print("KERNEL_OK")
</pallas_src>

<mosaic_0001>
module attributes {stable_mosaic.version = 11 : i64} {
  func.func @_mlp_kernel(%arg0: i32, %arg1: memref<8x128xf32, #tpu.memory_space<vmem>>, %arg2: memref<128x128xf32, #tpu.memory_space<vmem>>, %arg3: memref<1x128xf32, #tpu.memory_space<vmem>>, %arg4: memref<128x128xf32, #tpu.memory_space<vmem>>, %arg5: memref<1x128xf32, #tpu.memory_space<vmem>>, %arg6: memref<128x128xf32, #tpu.memory_space<vmem>>, %arg7: memref<1x128xf32, #tpu.memory_space<vmem>>, %arg8: memref<8x128xf32, #tpu.memory_space<vmem>>) attributes {dimension_semantics = [#tpu.dimension_semantics<parallel>], iteration_bounds = array<i64: 1>, scalar_prefetch = 0 : i64, scratch_operands = 0 : i64, tpu.core_type = #tpu.core_type<tc>, window_params = [{transform_indices = @transform_0, window_bounds = array<i64: 8, 128>}, {pipeline_mode = #tpu.pipeline_mode<synchronous>, transform_indices = @transform_1, window_bounds = array<i64: 128, 128>}, {pipeline_mode = #tpu.pipeline_mode<synchronous>, transform_indices = @transform_2, window_bounds = array<i64: 1, 128>}, {pipeline_mode = #tpu.pipeline_mode<synchronous>, transform_indices = @transform_3, window_bounds = array<i64: 128, 128>}, {pipeline_mode = #tpu.pipeline_mode<synchronous>, transform_indices = @transform_4, window_bounds = array<i64: 1, 128>}, {pipeline_mode = #tpu.pipeline_mode<synchronous>, transform_indices = @transform_5, window_bounds = array<i64: 128, 128>}, {pipeline_mode = #tpu.pipeline_mode<synchronous>, transform_indices = @transform_6, window_bounds = array<i64: 1, 128>}, {transform_indices = @transform_7, window_bounds = array<i64: 8, 128>}]} {
    %c0 = arith.constant 0 : index
    %c0_0 = arith.constant 0 : index
    %0 = vector.load %arg1[%c0, %c0_0] : memref<8x128xf32, #tpu.memory_space<vmem>>, vector<8x128xf32>
    %c0_1 = arith.constant 0 : index
    %c0_2 = arith.constant 0 : index
    %1 = vector.load %arg2[%c0_1, %c0_2] : memref<128x128xf32, #tpu.memory_space<vmem>>, vector<128x128xf32>
    %c0_3 = arith.constant 0 : index
    %c0_4 = arith.constant 0 : index
    %2 = vector.load %arg3[%c0_3, %c0_4] : memref<1x128xf32, #tpu.memory_space<vmem>>, vector<1x128xf32>
    %cst = arith.constant dense<0.000000e+00> : vector<8x128xf32>
    %3 = tpu.matmul %0, %1, %cst {dimension_numbers = #tpu.dot_dimension_numbers<[1], [0], [0], [1], [0, 0, 1, 1], [], []>} : vector<8x128xf32>, vector<128x128xf32>, vector<8x128xf32> -> vector<8x128xf32>
    %4 = vector.broadcast %2 : vector<1x128xf32> to vector<8x128xf32>
    %5 = arith.addf %3, %4 : vector<8x128xf32>
    %cst_5 = arith.constant 0.00999999977 : f32
    %6 = vector.broadcast %cst_5 : f32 to vector<8x128xf32>
    %7 = arith.mulf %6, %5 : vector<8x128xf32>
    %8 = arith.maximumf %5, %7 : vector<8x128xf32>
    %c0_6 = arith.constant 0 : index
    %c0_7 = arith.constant 0 : index
    %9 = vector.load %arg4[%c0_6, %c0_7] : memref<128x128xf32, #tpu.memory_space<vmem>>, vector<128x128xf32>
    %c0_8 = arith.constant 0 : index
    %c0_9 = arith.constant 0 : index
    %10 = vector.load %arg5[%c0_8, %c0_9] : memref<1x128xf32, #tpu.memory_space<vmem>>, vector<1x128xf32>
    %cst_10 = arith.constant dense<0.000000e+00> : vector<8x128xf32>
    %11 = tpu.matmul %8, %9, %cst_10 {dimension_numbers = #tpu.dot_dimension_numbers<[1], [0], [0], [1], [0, 0, 1, 1], [], []>} : vector<8x128xf32>, vector<128x128xf32>, vector<8x128xf32> -> vector<8x128xf32>
    %12 = vector.broadcast %10 : vector<1x128xf32> to vector<8x128xf32>
    %13 = arith.addf %11, %12 : vector<8x128xf32>
    %cst_11 = arith.constant 0.00999999977 : f32
    %14 = vector.broadcast %cst_11 : f32 to vector<8x128xf32>
    %15 = arith.mulf %14, %13 : vector<8x128xf32>
    %16 = arith.maximumf %13, %15 : vector<8x128xf32>
    %c0_12 = arith.constant 0 : index
    %c0_13 = arith.constant 0 : index
    %17 = vector.load %arg6[%c0_12, %c0_13] : memref<128x128xf32, #tpu.memory_space<vmem>>, vector<128x128xf32>
    %c0_14 = arith.constant 0 : index
    %c0_15 = arith.constant 0 : index
    %18 = vector.load %arg7[%c0_14, %c0_15] : memref<1x128xf32, #tpu.memory_space<vmem>>, vector<1x128xf32>
    %cst_16 = arith.constant dense<0.000000e+00> : vector<8x128xf32>
    %19 = tpu.matmul %16, %17, %cst_16 {dimension_numbers = #tpu.dot_dimension_numbers<[1], [0], [0], [1], [0, 0, 1, 1], [], []>} : vector<8x128xf32>, vector<128x128xf32>, vector<8x128xf32> -> vector<8x128xf32>
    %20 = vector.broadcast %18 : vector<1x128xf32> to vector<8x128xf32>
    %21 = arith.addf %19, %20 : vector<8x128xf32>
    %c0_17 = arith.constant 0 : index
    %c0_18 = arith.constant 0 : index
    %22 = vector.load %arg8[%c0_17, %c0_18] : memref<8x128xf32, #tpu.memory_space<vmem>>, vector<8x128xf32>
    tpu.vector_store %arg8[%c0_17, %c0_18], %21 {strides = array<i32>} : memref<8x128xf32, #tpu.memory_space<vmem>>, vector<8x128xf32>,
    return
  }
  func.func @transform_0(%arg0: i32) -> (i32, i32) {
    %c0_i32 = arith.constant 0 : i32
    %c0_i32_0 = arith.constant 0 : i32
    return %arg0, %c0_i32 : i32, i32
  }
  func.func @transform_1(%arg0: i32) -> (i32, i32) {
    %c0_i32 = arith.constant 0 : i32
    %c0_i32_0 = arith.constant 0 : i32
    %c0_i32_1 = arith.constant 0 : i32
    return %c0_i32, %c0_i32_0 : i32, i32
  }
  func.func @transform_2(%arg0: i32) -> (i32, i32) {
    %c0_i32 = arith.constant 0 : i32
    %c0_i32_0 = arith.constant 0 : i32
    %c0_i32_1 = arith.constant 0 : i32
    return %c0_i32, %c0_i32_0 : i32, i32
  }
  func.func @transform_3(%arg0: i32) -> (i32, i32) {
    %c0_i32 = arith.constant 0 : i32
    %c0_i32_0 = arith.constant 0 : i32
    %c0_i32_1 = arith.constant 0 : i32
    return %c0_i32, %c0_i32_0 : i32, i32
  }
  func.func @transform_4(%arg0: i32) -> (i32, i32) {
    %c0_i32 = arith.constant 0 : i32
    %c0_i32_0 = arith.constant 0 : i32
    %c0_i32_1 = arith.constant 0 : i32
    return %c0_i32, %c0_i32_0 : i32, i32
  }
  func.func @transform_5(%arg0: i32) -> (i32, i32) {
    %c0_i32 = arith.constant 0 : i32
    %c0_i32_0 = arith.constant 0 : i32
    %c0_i32_1 = arith.constant 0 : i32
    return %c0_i32, %c0_i32_0 : i32, i32
  }
  func.func @transform_6(%arg0: i32) -> (i32, i32) {
    %c0_i32 = arith.constant 0 : i32
    %c0_i32_0 = arith.constant 0 : i32
    %c0_i32_1 = arith.constant 0 : i32
    return %c0_i32, %c0_i32_0 : i32, i32
  }
  func.func @transform_7(%arg0: i32) -> (i32, i32) {
    %c0_i32 = arith.constant 0 : i32
    %c0_i32_0 = arith.constant 0 : i32
    return %arg0, %c0_i32 : i32, i32
  }
}

</mosaic_0001>

<llo_original>
// kernel: tpu_custom_call.1
$region0: #{tpu_custom_call.1}
  #allocation0 [shape = 'u32[]', space=smem, size = 0x4, offset = 0x4, fixed_abs, tag = 'smem constant byte address 0x4 - core index']
  #allocation1 [shape = 'u32[72,128]{1,0:T(1,128)}', space=vmem, size = 0x9000, scoped, tag = 'internal scratch']
  %s0 = inlined_call_operand.hbm [shape: f32[8,128], index: 0, kind: input, shape index: {}]
  %s1 = inlined_call_operand.hbm [shape: f32[128,128], index: 1, kind: input, shape index: {}]
  %s2 = inlined_call_operand.vmem [shape: f32[1,128], index: 2, kind: input, shape index: {}]
  %s3 = inlined_call_operand.hbm [shape: f32[128,128], index: 3, kind: input, shape index: {}]
  %s4 = inlined_call_operand.vmem [shape: f32[1,128], index: 4, kind: input, shape index: {}]
  %s5 = inlined_call_operand.hbm [shape: f32[128,128], index: 5, kind: input, shape index: {}]
  %s6 = inlined_call_operand.vmem [shape: f32[1,128], index: 6, kind: input, shape index: {}]
  %s7 = inlined_call_operand.hbm [shape: f32[8,128], index: 7, kind: output, shape index: {}]
  %s8 = sld [smem:[#allocation0]]
  $region54: #{tpu_custom_call.1} parent=0
    _
  %s10 = ssub.s32 1, %s8
  %s11 = scalar_select 0, %s10, %s8
  $region1: #{tpu_custom_call.1} parent=0
    #allocation2 [shape = 'u8[4096]{0}', space=vmem, size = 0x1000, scoped, tag = 'input window, operand 0, single buffered']
    #allocation3 [shape = 's32[1]{0}', space=sflag, size = 0x4, scoped, tag = 'scoped memory for tpu_custom_call.1']
    #allocation4 [shape = 's32[1]{0}', space=sflag, size = 0x4, scoped, tag = 'scoped memory for tpu_custom_call.1']
    #allocation5 [shape = 'u8[65536]{0}', space=vmem, size = 0x10000, scoped, tag = 'input window, operand 1, single buffered']
    #allocation6 [shape = 's32[1]{0}', space=sflag, size = 0x4, scoped, tag = 'scoped memory for tpu_custom_call.1']
    #allocation7 [shape = 'u8[65536]{0}', space=vmem, size = 0x10000, scoped, tag = 'input window, operand 3, single buffered']
    #allocation8 [shape = 'u8[65536]{0}', space=vmem, size = 0x10000, scoped, tag = 'input window, operand 5, single buffered']
    #allocation9 [shape = 's32[1]{0}', space=sflag, size = 0x4, scoped, tag = 'scoped memory for tpu_custom_call.1']
    #allocation10 [shape = 'u8[4096]{0}', space=vmem, size = 0x1000, scoped, tag = 'output window, operand 0, single buffered']
    %12 = vsyncpa [#allocation3], 0
    %13 = vsyncpa [#allocation6], 0
    %14 = vsyncpa [#allocation9], 0
    %15 = vsyncpa [#allocation4], 0
    // Predicated region
    $region2: #{tpu_custom_call.1} parent=1 // pred_check
      _
    $region3: #{tpu_custom_call.1} parent=1 // pred_check_branch
      %17 = sbr.rel (0) target = $region5
    $region4: #{tpu_custom_call.1} parent=1 // pred_region
      %19 = vsyncadd [#allocation3], 0
      %s21 = sshll.u32 %s0, 4
      %s22 = int_to_ptr.hbm [resolvable:$true] %s21
      %s23 = sshll.u32 [#allocation2], 4
      %s24 = int_to_ptr.vmem [resolvable:$true] %s23
      %26 = dma.hbm_to_vmem [thread:$0]  %s22, 128, %s24, [#allocation3]
    $region5: #{tpu_custom_call.1} parent=1 // pred_fallthru
      _
    // Predicated region
    $region6: #{tpu_custom_call.1} parent=1 // pred_check
      _
    $region7: #{tpu_custom_call.1} parent=1 // pred_check_branch
      %28 = sbr.rel (0) target = $region9
    $region8: #{tpu_custom_call.1} parent=1 // pred_region
      %30 = vsyncadd [#allocation6], 0
      %s31 = sshll.u32 %s1, 4
      %s32 = int_to_ptr.hbm [resolvable:$true] %s31
      %s33 = sshll.u32 [#allocation5], 4
      %s34 = int_to_ptr.vmem [resolvable:$true] %s33
      %39 = dma.hbm_to_vmem [thread:$0]  %s32, 2048, %s34, [#allocation6], 128, 128, 8
    $region9: #{tpu_custom_call.1} parent=1 // pred_fallthru
      _
    // Predicated region
    $region10: #{tpu_custom_call.1} parent=1 // pred_check
      _
    $region11: #{tpu_custom_call.1} parent=1 // pred_check_branch
      %41 = sbr.rel (0) target = $region13
    $region12: #{tpu_custom_call.1} parent=1 // pred_region
      _
    $region13: #{tpu_custom_call.1} parent=1 // pred_fallthru
      _
    // Predicated region
    $region14: #{tpu_custom_call.1} parent=1 // pred_check
      _
    $region15: #{tpu_custom_call.1} parent=1 // pred_check_branch
      %43 = sbr.rel (0) target = $region17
    $region16: #{tpu_custom_call.1} parent=1 // pred_region
      %45 = vsyncadd [#allocation6], 0
      %s46 = sshll.u32 %s3, 4
      %s47 = int_to_ptr.hbm [resolvable:$true] %s46
      %s48 = sshll.u32 [#allocation7], 4
      %s49 = int_to_ptr.vmem [resolvable:$true] %s48
      %54 = dma.hbm_to_vmem [thread:$0]  %s47, 2048, %s49, [#allocation6], 128, 128, 8
    $region17: #{tpu_custom_call.1} parent=1 // pred_fallthru
      _
    // Predicated region
    $region18: #{tpu_custom_call.1} parent=1 // pred_check
      _
    $region19: #{tpu_custom_call.1} parent=1 // pred_check_branch
      %56 = sbr.rel (0) target = $region21
    $region20: #{tpu_custom_call.1} parent=1 // pred_region
      _
    $region21: #{tpu_custom_call.1} parent=1 // pred_fallthru
      _
    // Predicated region
    $region22: #{tpu_custom_call.1} parent=1 // pred_check
      _
    $region23: #{tpu_custom_call.1} parent=1 // pred_check_branch
      %58 = sbr.rel (0) target = $region25
    $region24: #{tpu_custom_call.1} parent=1 // pred_region
      %60 = vsyncadd [#allocation9], 0
      %s61 = sshll.u32 %s5, 4
      %s62 = int_to_ptr.hbm [resolvable:$true] %s61
      %s63 = sshll.u32 [#allocation8], 4
      %s64 = int_to_ptr.vmem [resolvable:$true] %s63
      %69 = dma.hbm_to_vmem [thread:$0]  %s62, 2048, %s64, [#allocation9], 128, 128, 8
    $region25: #{tpu_custom_call.1} parent=1 // pred_fallthru
      _
    // Predicated region
    $region26: #{tpu_custom_call.1} parent=1 // pred_check
      _
    $region27: #{tpu_custom_call.1} parent=1 // pred_check_branch
      %71 = sbr.rel (0) target = $region29
    $region28: #{tpu_custom_call.1} parent=1 // pred_region
      _
    $region29: #{tpu_custom_call.1} parent=1 // pred_fallthru
      _
    // Predicated region
    $region30: #{tpu_custom_call.1} parent=1 // pred_check
      _
    $region31: #{tpu_custom_call.1} parent=1 // pred_check_branch
      %73 = sbr.rel (0) target = $region33
    $region32: #{tpu_custom_call.1} parent=1 // pred_region
      %75 = dma.done [#allocation3], 128
    $region33: #{tpu_custom_call.1} parent=1 // pred_fallthru
      _
    // Predicated region
    $region34: #{tpu_custom_call.1} parent=1 // pred_check
      _
    $region35: #{tpu_custom_call.1} parent=1 // pred_check_branch
      %77 = sbr.rel (0) target = $region37
    $region36: #{tpu_custom_call.1} parent=1 // pred_region
      %79 = dma.done [#allocation6], 2048
    $region37: #{tpu_custom_call.1} parent=1 // pred_fallthru
      _
    // Predicated region
    $region38: #{tpu_custom_call.1} parent=1 // pred_check
      _
    $region39: #{tpu_custom_call.1} parent=1 // pred_check_branch
      %81 = sbr.rel (0) target = $region41
    $region40: #{tpu_custom_call.1} parent=1 // pred_region
      %83 = dma.done [#allocation6], 2048
    $region41: #{tpu_custom_call.1} parent=1 // pred_fallthru
      _
    // Predicated region
    $region42: #{tpu_custom_call.1} parent=1 // pred_check
      _
    $region43: #{tpu_custom_call.1} parent=1 // pred_check_branch
      %85 = sbr.rel (0) target = $region45
    $region44: #{tpu_custom_call.1} parent=1 // pred_region
      %87 = dma.done [#allocation9], 2048
    $region45: #{tpu_custom_call.1} parent=1 // pred_fallthru
      _
    %v88 = vld [vmem:[#allocation2] sm:$0xff]
    %v89 = vld [vmem:[#allocation5] sm:$0xff]
    %v90 = vld [vmem:[#allocation5 + $0x8] sm:$0xff]
    %v91 = vld [vmem:[#allocation5 + $0x10] sm:$0xff]
    %v92 = vld [vmem:[#allocation5 + $0x18] sm:$0xff]
    %v93 = vld [vmem:[#allocation5 + $0x20] sm:$0xff]
    %v94 = vld [vmem:[#allocation5 + $0x28] sm:$0xff]
    %v95 = vld [vmem:[#allocation5 + $0x30] sm:$0xff]
    %v96 = vld [vmem:[#allocation5 + $0x38] sm:$0xff]
    %v97 = vld [vmem:[#allocation5 + $0x40] sm:$0xff]
    %v98 = vld [vmem:[#allocation5 + $0x48] sm:$0xff]
    %v99 = vld [vmem:[#allocation5 + $0x50] sm:$0xff]
    %v100 = vld [vmem:[#allocation5 + $0x58] sm:$0xff]
    %v101 = vld [vmem:[#allocation5 + $0x60] sm:$0xff]
    %v102 = vld [vmem:[#allocation5 + $0x68] sm:$0xff]
    %v103 = vld [vmem:[#allocation5 + $0x70] sm:$0xff]
    %v104 = vld [vmem:[#allocation5 + $0x78] sm:$0xff]
    %v105 = vld [vmem:[%s2] sm:$0x1]
    %v107 = vperm.slane %v105, 0
    %109 = vmatpush.msra.mxu0 %v104
    %110 = vmatpush.msra.mxu0 %v103
    %111 = vmatpush.msra.mxu0 %v102
    %112 = vmatpush.msra.mxu0 %v101
    %113 = vmatpush.msra.mxu0 %v100
    %114 = vmatpush.msra.mxu0 %v99
    %115 = vmatpush.msra.mxu0 %v98
    %116 = vmatpush.msra.mxu0 %v97
    %117 = vmatpush.msra.mxu0 %v96
    %118 = vmatpush.msra.mxu0 %v95
    %119 = vmatpush.msra.mxu0 %v94
    %120 = vmatpush.msra.mxu0 %v93
    %121 = vmatpush.msra.mxu0 %v92
    %122 = vmatpush.msra.mxu0 %v91
    %123 = vmatpush.msra.mxu0 %v90
    %124 = vmatpush.msra.mxu0 %v89
    %125 = vmatmul.f32.gmra.mxu0 %v88
    %v126 = vpop.f32.mrf.mxu0
    %v127 = vadd.f32 %v107, %v126
    %128 = vdwg.mxu0
    %v129 = vmul.f32 %v127, 0.01
    %v130 = vmax.f32 %v127, %v129
    %v131 = vld [vmem:[#allocation7] sm:$0xff]
    %v132 = vld [vmem:[#allocation7 + $0x8] sm:$0xff]
    %v133 = vld [vmem:[#allocation7 + $0x10] sm:$0xff]
    %v134 = vld [vmem:[#allocation7 + $0x18] sm:$0xff]
    %v135 = vld [vmem:[#allocation7 + $0x20] sm:$0xff]
    %v136 = vld [vmem:[#allocation7 + $0x28] sm:$0xff]
    %v137 = vld [vmem:[#allocation7 + $0x30] sm:$0xff]
    %v138 = vld [vmem:[#allocation7 + $0x38] sm:$0xff]
    %v139 = vld [vmem:[#allocation7 + $0x40] sm:$0xff]
    %v140 = vld [vmem:[#allocation7 + $0x48] sm:$0xff]
    %v141 = vld [vmem:[#allocation7 + $0x50] sm:$0xff]
    %v142 = vld [vmem:[#allocation7 + $0x58] sm:$0xff]
    %v143 = vld [vmem:[#allocation7 + $0x60] sm:$0xff]
    %v144 = vld [vmem:[#allocation7 + $0x68] sm:$0xff]
    %v145 = vld [vmem:[#allocation7 + $0x70] sm:$0xff]
    %v146 = vld [vmem:[#allocation7 + $0x78] sm:$0xff]
    %v147 = vld [vmem:[%s4] sm:$0x1]
    %v149 = vperm.slane %v147, 0
    %151 = vmatpush.msra.mxu0 %v146
    %152 = vmatpush.msra.mxu0 %v145
    %153 = vmatpush.msra.mxu0 %v144
    %154 = vmatpush.msra.mxu0 %v143
    %155 = vmatpush.msra.mxu0 %v142
    %156 = vmatpush.msra.mxu0 %v141
    %157 = vmatpush.msra.mxu0 %v140
    %158 = vmatpush.msra.mxu0 %v139
    %159 = vmatpush.msra.mxu0 %v138
    %160 = vmatpush.msra.mxu0 %v137
    %161 = vmatpush.msra.mxu0 %v136
    %162 = vmatpush.msra.mxu0 %v135
    %163 = vmatpush.msra.mxu0 %v134
    %164 = vmatpush.msra.mxu0 %v133
    %165 = vmatpush.msra.mxu0 %v132
    %166 = vmatpush.msra.mxu0 %v131
    %167 = vmatmul.f32.gmra.mxu0 %v130
    %v168 = vpop.f32.mrf.mxu0
    %v169 = vadd.f32 %v149, %v168
    %170 = vdwg.mxu0
    %v171 = vmul.f32 %v169, 0.01
    %v172 = vmax.f32 %v169, %v171
    %v173 = vld [vmem:[#allocation8] sm:$0xff]
    %v174 = vld [vmem:[#allocation8 + $0x8] sm:$0xff]
    %v175 = vld [vmem:[#allocation8 + $0x10] sm:$0xff]
    %v176 = vld [vmem:[#allocation8 + $0x18] sm:$0xff]
    %v177 = vld [vmem:[#allocation8 + $0x20] sm:$0xff]
    %v178 = vld [vmem:[#allocation8 + $0x28] sm:$0xff]
    %v179 = vld [vmem:[#allocation8 + $0x30] sm:$0xff]
    %v180 = vld [vmem:[#allocation8 + $0x38] sm:$0xff]
    %v181 = vld [vmem:[#allocation8 + $0x40] sm:$0xff]
    %v182 = vld [vmem:[#allocation8 + $0x48] sm:$0xff]
    %v183 = vld [vmem:[#allocation8 + $0x50] sm:$0xff]
    %v184 = vld [vmem:[#allocation8 + $0x58] sm:$0xff]
    %v185 = vld [vmem:[#allocation8 + $0x60] sm:$0xff]
    %v186 = vld [vmem:[#allocation8 + $0x68] sm:$0xff]
    %v187 = vld [vmem:[#allocation8 + $0x70] sm:$0xff]
    %v188 = vld [vmem:[#allocation8 + $0x78] sm:$0xff]
    %v189 = vld [vmem:[%s6] sm:$0x1]
    %v191 = vperm.slane %v189, 0
    %193 = vmatpush.msra.mxu0 %v188
    %194 = vmatpush.msra.mxu0 %v187
    %195 = vmatpush.msra.mxu0 %v186
    %196 = vmatpush.msra.mxu0 %v185
    %197 = vmatpush.msra.mxu0 %v184
    %198 = vmatpush.msra.mxu0 %v183
    %199 = vmatpush.msra.mxu0 %v182
    %200 = vmatpush.msra.mxu0 %v181
    %201 = vmatpush.msra.mxu0 %v180
    %202 = vmatpush.msra.mxu0 %v179
    %203 = vmatpush.msra.mxu0 %v178
    %204 = vmatpush.msra.mxu0 %v177
    %205 = vmatpush.msra.mxu0 %v176
    %206 = vmatpush.msra.mxu0 %v175
    %207 = vmatpush.msra.mxu0 %v174
    %208 = vmatpush.msra.mxu0 %v173
    %209 = vmatmul.f32.gmra.mxu0 %v172
    %v210 = vpop.f32.mrf.mxu0
    %v211 = vadd.f32 %v191, %v210
    %212 = vdwg.mxu0
    %213 = vst [vmem:[#allocation10] sm:$0xff] %v211
    // Predicated region
    $region46: #{tpu_custom_call.1} parent=1 // pred_check
      _
    $region47: #{tpu_custom_call.1} parent=1 // pred_check_branch
      %215 = sbr.rel (0) target = $region49
    $region48: #{tpu_custom_call.1} parent=1 // pred_region
      %217 = vsyncadd [#allocation4], 0
      %s219 = sshll.u32 [#allocation10], 4
      %s220 = int_to_ptr.vmem [resolvable:$true] %s219
      %s221 = sshll.u32 %s7, 4
      %s222 = int_to_ptr.hbm [resolvable:$true] %s221
      %224 = dma.vmem_to_hbm [thread:$0]  %s220, 128, %s222, [#allocation4]
    $region49: #{tpu_custom_call.1} parent=1 // pred_fallthru
      _
    // Predicated region
    $region50: #{tpu_custom_call.1} parent=1 // pred_check
      _
    $region51: #{tpu_custom_call.1} parent=1 // pred_check_branch
      %226 = sbr.rel (0) target = $region53
    $region52: #{tpu_custom_call.1} parent=1 // pred_region
      %228 = dma.done [#allocation4], 128
    $region53: #{tpu_custom_call.1} parent=1 // pred_fallthru
      _
    %229 = vsyncpa [#allocation3], 1
    %230 = vsyncpa [#allocation6], 1
    %231 = vsyncpa [#allocation9], 1
    %232 = vsyncpa [#allocation4], 1

</llo_original>
